<compile_context>
chip_gen: v7x
topology: tpu7x:2x2x1
jax: 0.10.0
libtpu: 0.0.40
codegen_flags: <defaults>
</compile_context>

<pallas_src>
import jax
import jax.numpy as jnp
from jax.experimental import pallas as pl
from jax.experimental.pallas import tpu as pltpu


def dummy_sort_kernel(x_ref, w_ref, b_ref, o_ref):
    S = o_ref.shape[1]
    bf16 = jnp.bfloat16

    # Tiny bias slab: load once, bind rows to locals (no re-broadcast).
    bs = b_ref[...]                      # (5, 64) f32
    b1 = bs[0:1, :]
    b2 = bs[1:2, :]
    b3 = bs[2:3, :]
    b4 = bs[3:4, :]
    b5 = bs[4:5, :]

    # conv1 (center tap) + ReLU : (B,S) @ (S,64) -> (B,64)
    # x is cast to bf16 HERE (in-kernel VPU op) rather than in the wrapper.
    # NOTE: exact for integer inputs < 256; larger inputs would be quantized.
    w1 = w_ref[0][:S, :]                 # only first S rows are non-zero
    h = jnp.dot(x_ref[...].astype(bf16), w1, preferred_element_type=jnp.float32)
    h = jnp.maximum(h + b1, 0.0)         # lanes 32..63: relu(0+0) == 0

    # conv2 (center tap) + ReLU : (B,64) @ (64,64) -> (B,64)
    # (rows 32..63 of w_ref[1] are zero, matching the zero lanes of h)
    h = jnp.dot(h.astype(bf16), w_ref[1], preferred_element_type=jnp.float32)
    h = jnp.maximum(h + b2, 0.0)

    # MaxPool1d(2, padding=1) at L=1 is the identity (max(-inf, h) == h).
    # conv3 (center tap) + ReLU : (B,64) @ (64,64) -> (B,64)
    h = jnp.dot(h.astype(bf16), w_ref[2], preferred_element_type=jnp.float32)
    h = jnp.maximum(h + b3, 0.0)

    # second MaxPool1d(2, padding=1) at L=1 is also the identity.
    # Flatten(1,2): (B,64,1) -> (B,64) -- no data movement needed.
    # Linear(64,64) + ReLU
    h = jnp.dot(h.astype(bf16), w_ref[3], preferred_element_type=jnp.float32)
    h = jnp.maximum(h + b4, 0.0)

    # Linear(64,size): cols S..63 of w_ref[4] (and of b5) are zero padding.
    o = jnp.dot(h.astype(bf16), w_ref[4], preferred_element_type=jnp.float32) + b5
    o_ref[...] = o[:, :S]


def pack_params(p):
    """One-time packing: ALL weights in one padded (5,64,64) bf16 slab and all
    biases in one (5,64) f32 slab -> 3 kernel operands (x, wslab, bslab)."""
    S = p["w1t"].shape[0]
    assert S <= 64, "packed (5,64,64) layout assumes size <= 64"
    w = jnp.zeros((5, 64, 64), jnp.float32)
    w = w.at[0, :S, :32].set(p["w1t"])       # conv1 center tap (cols 32..63 zero)
    w = w.at[1, :32, :].set(p["w2t"])        # conv2 center tap (rows 32..63 zero)
    w = w.at[2].set(p["w3t"])                # conv3 center tap
    w = w.at[3].set(p["w4t"])                # classifier Linear(64,64)
    w = w.at[4, :, :S].set(p["w5t"])         # classifier Linear(64,size)
    wslab = w.astype(jnp.bfloat16)

    b = jnp.zeros((5, 64), jnp.float32)
    b = b.at[0, :32].set(p["b1"][0])
    b = b.at[1, :64].set(p["b2"][0])
    b = b.at[2, :64].set(p["b3"][0])
    b = b.at[3, :64].set(p["b4"][0])
    b = b.at[4, :S].set(p["b5"][0])
    return dict(wslab=wslab, bslab=b)


def dummy_nn_sort_forward(x, packed):
    """x: (B, size) float32 (cast to bf16 inside the kernel)."""
    B, S = x.shape
    vmem = pl.BlockSpec(memory_space=pltpu.MemorySpace.VMEM)
    return pl.pallas_call(
        dummy_sort_kernel,
        out_shape=jax.ShapeDtypeStruct((B, S), jnp.float32),
        in_specs=[vmem, vmem, vmem],
        out_specs=vmem,
    )(x, packed["wslab"], packed["bslab"])


def init_params(size, key):
    """Deterministic synthetic init matching the PyTorch module's shapes.

    Conv1d weights in PyTorch are (C_out, C_in, k=3); only the center tap
    (index 1) ever contributes for L=1 inputs, so we materialize just that
    slice (transposed to (C_in, C_out) for the kernel)."""
    ks = jax.random.split(key, 10)
    sc = 0.1
    w1t = sc * jax.random.normal(ks[0], (size, 32), jnp.float32)
    b1 = sc * jax.random.normal(ks[1], (1, 32), jnp.float32)
    w2t = sc * jax.random.normal(ks[2], (32, 64), jnp.float32)
    b2 = sc * jax.random.normal(ks[3], (1, 64), jnp.float32)
    w3t = sc * jax.random.normal(ks[4], (64, 64), jnp.float32)
    b3 = sc * jax.random.normal(ks[5], (1, 64), jnp.float32)
    w4t = sc * jax.random.normal(ks[6], (64, 64), jnp.float32)
    b4 = sc * jax.random.normal(ks[7], (1, 64), jnp.float32)
    w5t = sc * jax.random.normal(ks[8], (64, size), jnp.float32)
    b5 = sc * jax.random.normal(ks[9], (1, size), jnp.float32)
    return dict(w1t=w1t, b1=b1, w2t=w2t, b2=b2, w3t=w3t, b3=b3,
                w4t=w4t, b4=b4, w5t=w5t, b5=b5)


def reference_forward_f32(x, p):
    """Pure-JAX f32 reference mirroring the PyTorch forward."""
    h = jnp.maximum(x @ p["w1t"] + p["b1"], 0.0)
    h = jnp.maximum(h @ p["w2t"] + p["b2"], 0.0)   # maxpool(L=1) == identity
    h = jnp.maximum(h @ p["w3t"] + p["b3"], 0.0)   # maxpool(L=1) == identity
    h = jnp.maximum(h @ p["w4t"] + p["b4"], 0.0)
    return h @ p["w5t"] + p["b5"]


def reference_forward_mixed(x, p):
    """Pure-JAX reference with the same bf16-operand / f32-accumulate scheme
    as the kernel (tight-tolerance check)."""
    bf = jnp.bfloat16
    def mm(a, w):
        return jnp.dot(a.astype(bf), w.astype(bf),
                       preferred_element_type=jnp.float32)
    h = jnp.maximum(mm(x, p["w1t"]) + p["b1"], 0.0)
    h = jnp.maximum(mm(h, p["w2t"]) + p["b2"], 0.0)
    h = jnp.maximum(mm(h, p["w3t"]) + p["b3"], 0.0)
    h = jnp.maximum(mm(h, p["w4t"]) + p["b4"], 0.0)
    return mm(h, p["w5t"]) + p["b5"]


if __name__ == "__main__":
    SIZE = 16   # length of the "list of integers" == Conv1d in-channels
    BATCH = 8

    key = jax.random.PRNGKey(0)
    k_x, k_p = jax.random.split(key)
    # "list of integers" input, cast to float32 (as the PyTorch conv requires).
    # The center-tap / maxpool-identity collapse is exact because the module
    # always runs at spatial length L=1 (x.unsqueeze(-1)).
    x = jax.random.randint(k_x, (BATCH, SIZE), 0, 100).astype(jnp.float32)
    params = init_params(SIZE, k_p)
    packed = pack_params(params)

    fwd = jax.jit(dummy_nn_sort_forward)
    out = fwd(x, packed)
    out = jax.block_until_ready(out)

    assert out.shape == (BATCH, SIZE)
    # Tight check against an identically-quantized (bf16 operand) reference.
    ref_mixed = reference_forward_mixed(x, params)
    assert jnp.allclose(out, ref_mixed, atol=1e-2, rtol=1e-2)
    # Loose semantic check against the full-f32 PyTorch-equivalent forward.
    ref_f32 = reference_forward_f32(x, params)
    assert jnp.allclose(out, ref_f32, atol=0.5, rtol=5e-2)

    print("KERNEL_OK")
</pallas_src>

<mosaic_0001>
module attributes {stable_mosaic.version = 11 : i64} {
  func.func @dummy_sort_kernel(%arg0: memref<8x16xf32, #tpu.memory_space<vmem>>, %arg1: memref<5x64x64xbf16, #tpu.memory_space<vmem>>, %arg2: memref<5x64xf32, #tpu.memory_space<vmem>>, %arg3: memref<8x16xf32, #tpu.memory_space<vmem>>) attributes {dimension_semantics = [], scalar_prefetch = 0 : i64, scratch_operands = 0 : i64, tpu.core_type = #tpu.core_type<tc>} {
    %c0 = arith.constant 0 : index
    %c0_0 = arith.constant 0 : index
    %0 = vector.load %arg2[%c0, %c0_0] : memref<5x64xf32, #tpu.memory_space<vmem>>, vector<5x64xf32>
    %1 = vector.extract_strided_slice %0 {offsets = [0, 0], sizes = [1, 64], strides = [1, 1]} : vector<5x64xf32> to vector<1x64xf32>
    %2 = vector.extract_strided_slice %0 {offsets = [1, 0], sizes = [1, 64], strides = [1, 1]} : vector<5x64xf32> to vector<1x64xf32>
    %3 = vector.extract_strided_slice %0 {offsets = [2, 0], sizes = [1, 64], strides = [1, 1]} : vector<5x64xf32> to vector<1x64xf32>
    %4 = vector.extract_strided_slice %0 {offsets = [3, 0], sizes = [1, 64], strides = [1, 1]} : vector<5x64xf32> to vector<1x64xf32>
    %5 = vector.extract_strided_slice %0 {offsets = [4, 0], sizes = [1, 64], strides = [1, 1]} : vector<5x64xf32> to vector<1x64xf32>
    %c0_1 = arith.constant 0 : index
    %c0_2 = arith.constant 0 : index
    %c0_3 = arith.constant 0 : index
    %6 = vector.load %arg1[%c0_1, %c0_2, %c0_3] : memref<5x64x64xbf16, #tpu.memory_space<vmem>>, vector<1x64x64xbf16>
    %7 = vector.shape_cast %6 : vector<1x64x64xbf16> to vector<64x64xbf16>
    %8 = vector.extract_strided_slice %7 {offsets = [0, 0], sizes = [16, 64], strides = [1, 1]} : vector<64x64xbf16> to vector<16x64xbf16>
    %c0_4 = arith.constant 0 : index
    %c0_5 = arith.constant 0 : index
    %9 = vector.load %arg0[%c0_4, %c0_5] : memref<8x16xf32, #tpu.memory_space<vmem>>, vector<8x16xf32>
    %10 = arith.truncf %9 : vector<8x16xf32> to vector<8x16xbf16>
    %cst = arith.constant dense<0.000000e+00> : vector<8x64xf32>
    %11 = tpu.matmul %10, %8, %cst {dimension_numbers = #tpu.dot_dimension_numbers<[1], [0], [0], [1], [0, 0, 1, 1], [], []>} : vector<8x16xbf16>, vector<16x64xbf16>, vector<8x64xf32> -> vector<8x64xf32>
    %12 = vector.broadcast %1 : vector<1x64xf32> to vector<8x64xf32>
    %13 = arith.addf %11, %12 : vector<8x64xf32>
    %cst_6 = arith.constant 0.000000e+00 : f32
    %14 = vector.broadcast %cst_6 : f32 to vector<8x64xf32>
    %15 = arith.maximumf %13, %14 : vector<8x64xf32>
    %16 = arith.truncf %15 : vector<8x64xf32> to vector<8x64xbf16>
    %c1 = arith.constant 1 : index
    %c0_7 = arith.constant 0 : index
    %c0_8 = arith.constant 0 : index
    %17 = vector.load %arg1[%c1, %c0_7, %c0_8] : memref<5x64x64xbf16, #tpu.memory_space<vmem>>, vector<1x64x64xbf16>
    %18 = vector.shape_cast %17 : vector<1x64x64xbf16> to vector<64x64xbf16>
    %cst_9 = arith.constant dense<0.000000e+00> : vector<8x64xf32>
    %19 = tpu.matmul %16, %18, %cst_9 {dimension_numbers = #tpu.dot_dimension_numbers<[1], [0], [0], [1], [0, 0, 1, 1], [], []>} : vector<8x64xbf16>, vector<64x64xbf16>, vector<8x64xf32> -> vector<8x64xf32>
    %20 = vector.broadcast %2 : vector<1x64xf32> to vector<8x64xf32>
    %21 = arith.addf %19, %20 : vector<8x64xf32>
    %cst_10 = arith.constant 0.000000e+00 : f32
    %22 = vector.broadcast %cst_10 : f32 to vector<8x64xf32>
    %23 = arith.maximumf %21, %22 : vector<8x64xf32>
    %24 = arith.truncf %23 : vector<8x64xf32> to vector<8x64xbf16>
    %c2 = arith.constant 2 : index
    %c0_11 = arith.constant 0 : index
    %c0_12 = arith.constant 0 : index
    %25 = vector.load %arg1[%c2, %c0_11, %c0_12] : memref<5x64x64xbf16, #tpu.memory_space<vmem>>, vector<1x64x64xbf16>
    %26 = vector.shape_cast %25 : vector<1x64x64xbf16> to vector<64x64xbf16>
    %cst_13 = arith.constant dense<0.000000e+00> : vector<8x64xf32>
    %27 = tpu.matmul %24, %26, %cst_13 {dimension_numbers = #tpu.dot_dimension_numbers<[1], [0], [0], [1], [0, 0, 1, 1], [], []>} : vector<8x64xbf16>, vector<64x64xbf16>, vector<8x64xf32> -> vector<8x64xf32>
    %28 = vector.broadcast %3 : vector<1x64xf32> to vector<8x64xf32>
    %29 = arith.addf %27, %28 : vector<8x64xf32>
    %cst_14 = arith.constant 0.000000e+00 : f32
    %30 = vector.broadcast %cst_14 : f32 to vector<8x64xf32>
    %31 = arith.maximumf %29, %30 : vector<8x64xf32>
    %32 = arith.truncf %31 : vector<8x64xf32> to vector<8x64xbf16>
    %c3 = arith.constant 3 : index
    %c0_15 = arith.constant 0 : index
    %c0_16 = arith.constant 0 : index
    %33 = vector.load %arg1[%c3, %c0_15, %c0_16] : memref<5x64x64xbf16, #tpu.memory_space<vmem>>, vector<1x64x64xbf16>
    %34 = vector.shape_cast %33 : vector<1x64x64xbf16> to vector<64x64xbf16>
    %cst_17 = arith.constant dense<0.000000e+00> : vector<8x64xf32>
    %35 = tpu.matmul %32, %34, %cst_17 {dimension_numbers = #tpu.dot_dimension_numbers<[1], [0], [0], [1], [0, 0, 1, 1], [], []>} : vector<8x64xbf16>, vector<64x64xbf16>, vector<8x64xf32> -> vector<8x64xf32>
    %36 = vector.broadcast %4 : vector<1x64xf32> to vector<8x64xf32>
    %37 = arith.addf %35, %36 : vector<8x64xf32>
    %cst_18 = arith.constant 0.000000e+00 : f32
    %38 = vector.broadcast %cst_18 : f32 to vector<8x64xf32>
    %39 = arith.maximumf %37, %38 : vector<8x64xf32>
    %40 = arith.truncf %39 : vector<8x64xf32> to vector<8x64xbf16>
    %c4 = arith.constant 4 : index
    %c0_19 = arith.constant 0 : index
    %c0_20 = arith.constant 0 : index
    %41 = vector.load %arg1[%c4, %c0_19, %c0_20] : memref<5x64x64xbf16, #tpu.memory_space<vmem>>, vector<1x64x64xbf16>
    %42 = vector.shape_cast %41 : vector<1x64x64xbf16> to vector<64x64xbf16>
    %cst_21 = arith.constant dense<0.000000e+00> : vector<8x64xf32>
    %43 = tpu.matmul %40, %42, %cst_21 {dimension_numbers = #tpu.dot_dimension_numbers<[1], [0], [0], [1], [0, 0, 1, 1], [], []>} : vector<8x64xbf16>, vector<64x64xbf16>, vector<8x64xf32> -> vector<8x64xf32>
    %44 = vector.broadcast %5 : vector<1x64xf32> to vector<8x64xf32>
    %45 = arith.addf %43, %44 : vector<8x64xf32>
    %46 = vector.extract_strided_slice %45 {offsets = [0, 0], sizes = [8, 16], strides = [1, 1]} : vector<8x64xf32> to vector<8x16xf32>
    %c0_22 = arith.constant 0 : index
    %c0_23 = arith.constant 0 : index
    %47 = vector.load %arg3[%c0_22, %c0_23] : memref<8x16xf32, #tpu.memory_space<vmem>>, vector<8x16xf32>
    tpu.vector_store %arg3[%c0_22, %c0_23], %46 {strides = array<i32>} : memref<8x16xf32, #tpu.memory_space<vmem>>, vector<8x16xf32>,
    return
  }
}

</mosaic_0001>

<llo_original>
// kernel: dummy_nn_sort_forward.1
$region0: #{dummy_nn_sort_forward.1}
  #allocation0 [shape = 'u32[]', space=smem, size = 0x4, offset = 0x4, fixed_abs, tag = 'smem constant byte address 0x4 - core index']
  #allocation1 [shape = 'u32[144,128]{1,0:T(1,128)}', space=vmem, size = 0x12000, scoped, tag = 'internal scratch']
  %s0 = inlined_call_operand.hbm [shape: f32[8,16], index: 0, kind: input, shape index: {}]
  %s1 = inlined_call_operand.hbm [shape: bf16[5,64,64], index: 1, kind: input, shape index: {}]
  %s2 = inlined_call_operand.hbm [shape: f32[5,64], index: 2, kind: input, shape index: {}]
  %s3 = inlined_call_operand.hbm [shape: f32[8,16], index: 3, kind: output, shape index: {}]
  %s4 = sld [smem:[#allocation0]]
  $region34: #{dummy_nn_sort_forward.1} parent=0
    _
  %s6 = ssub.s32 1, %s4
  %s7 = scalar_select 0, %s6, %s4
  $region1: #{dummy_nn_sort_forward.1} parent=0
    #allocation2 [shape = 'u8[4096]{0}', space=vmem, size = 0x1000, scoped, tag = 'input window, operand 0, single buffered']
    #allocation3 [shape = 's32[1]{0}', space=sflag, size = 0x4, scoped, tag = 'scoped memory for dummy_nn_sort_forward.1']
    #allocation4 [shape = 's32[1]{0}', space=sflag, size = 0x4, scoped, tag = 'scoped memory for dummy_nn_sort_forward.1']
    #allocation5 [shape = 'u8[81920]{0}', space=vmem, size = 0x14000, scoped, tag = 'input window, operand 1, single buffered']
    #allocation6 [shape = 's32[1]{0}', space=sflag, size = 0x4, scoped, tag = 'scoped memory for dummy_nn_sort_forward.1']
    #allocation7 [shape = 'u8[4096]{0}', space=vmem, size = 0x1000, scoped, tag = 'input window, operand 2, single buffered']
    #allocation8 [shape = 'u8[4096]{0}', space=vmem, size = 0x1000, scoped, tag = 'output window, operand 0, single buffered']
    %8 = vsyncpa [#allocation3], 0
    %9 = vsyncpa [#allocation6], 0
    %10 = vsyncpa [#allocation4], 0
    // Predicated region
    $region2: #{dummy_nn_sort_forward.1} parent=1 // pred_check
      _
    $region3: #{dummy_nn_sort_forward.1} parent=1 // pred_check_branch
      %12 = sbr.rel (0) target = $region5
    $region4: #{dummy_nn_sort_forward.1} parent=1 // pred_region
      %s14 = ssub.s32 128, 128
      %15 = vsyncadd [#allocation3], %s14
      %s17 = sshll.u32 [#allocation2], 4
      %s18 = int_to_ptr.vmem [resolvable:$true] %s17
      %20 = dma.hbm_to_vmem [thread:$0]  %s0, 128, %s18, [#allocation3]
    $region5: #{dummy_nn_sort_forward.1} parent=1 // pred_fallthru
      _
    // Predicated region
    $region6: #{dummy_nn_sort_forward.1} parent=1 // pred_check
      _
    $region7: #{dummy_nn_sort_forward.1} parent=1 // pred_check_branch
      %22 = sbr.rel (0) target = $region9
    $region8: #{dummy_nn_sort_forward.1} parent=1 // pred_region
      %s24 = ssub.s32 2560, 2560
      %25 = vsyncadd [#allocation6], %s24
      %s26 = sshll.u32 [#allocation5], 4
      %s27 = int_to_ptr.vmem [resolvable:$true] %s26
      %32 = dma.hbm_to_vmem [thread:$0]  %s1, 2560, %s27, [#allocation6], 64, 64, 4
    $region9: #{dummy_nn_sort_forward.1} parent=1 // pred_fallthru
      _
    // Predicated region
    $region10: #{dummy_nn_sort_forward.1} parent=1 // pred_check
      _
    $region11: #{dummy_nn_sort_forward.1} parent=1 // pred_check_branch
      %34 = sbr.rel (0) target = $region13
    $region12: #{dummy_nn_sort_forward.1} parent=1 // pred_region
      %s36 = ssub.s32 128, 128
      %37 = vsyncadd [#allocation6], %s36
      %s39 = sshll.u32 [#allocation7], 4
      %s40 = int_to_ptr.vmem [resolvable:$true] %s39
      %42 = dma.hbm_to_vmem [thread:$0]  %s2, 128, %s40, [#allocation6]
    $region13: #{dummy_nn_sort_forward.1} parent=1 // pred_fallthru
      _
    // Predicated region
    $region14: #{dummy_nn_sort_forward.1} parent=1 // pred_check
      _
    $region15: #{dummy_nn_sort_forward.1} parent=1 // pred_check_branch
      %44 = sbr.rel (0) target = $region17
    $region16: #{dummy_nn_sort_forward.1} parent=1 // pred_region
      %45 = dma.done [#allocation3], 128
    $region17: #{dummy_nn_sort_forward.1} parent=1 // pred_fallthru
      _
    // Predicated region
    $region18: #{dummy_nn_sort_forward.1} parent=1 // pred_check
      _
    $region19: #{dummy_nn_sort_forward.1} parent=1 // pred_check_branch
      %47 = sbr.rel (0) target = $region21
    $region20: #{dummy_nn_sort_forward.1} parent=1 // pred_region
      %48 = dma.done [#allocation6], 2560
    $region21: #{dummy_nn_sort_forward.1} parent=1 // pred_fallthru
      _
    // Predicated region
    $region22: #{dummy_nn_sort_forward.1} parent=1 // pred_check
      _
    $region23: #{dummy_nn_sort_forward.1} parent=1 // pred_check_branch
      %50 = sbr.rel (0) target = $region25
    $region24: #{dummy_nn_sort_forward.1} parent=1 // pred_region
      %51 = dma.done [#allocation6], 128
    $region25: #{dummy_nn_sort_forward.1} parent=1 // pred_fallthru
      _
    %v53 = vld [vmem:[#allocation7] sm:$0x1f]
    %v54 = vld [vmem:[#allocation5] sm:$0xf]
    %v55 = vld [vmem:[#allocation5 + $0x4] sm:$0xf]
    %v56 = vld [vmem:[#allocation2] sm:$0xff]
    %v57 = vpack.c.bf16 %v56, %v56
    %v58 = vlaneseq
    %v59 = vshrl.u32 %v58, 7
    %v60 = vsub.s32 0, %v59
    %v61 = vrot.slane %v53, %v60
    %v64 = vunpack.c.l.b16 %v54
    %v65 = vunpack.c.l.b16 %v55
    %v66 = vpack.c.b16 %v65, %v64
    %vm68 = vcmask 130048
    %v70 = vsel %vm68, %v57, 0
    %72 = vmatprep.subr.bf16.mxu0 0
    %73 = vmatpush1.bf16.msra.mxu0 %v66
    %74 = vmatprep.subr.bf16.mxu0 0
    %75 = vmatpush1.bf16.msra.mxu0 0
    %76 = vmatprep.subr.bf16.mxu0 0
    %77 = vmatpush1.bf16.msra.mxu0 0
    %78 = vmatprep.subr.bf16.mxu0 0
    %79 = vmatpush1.bf16.msra.mxu0 0
    %80 = vmatprep.subr.bf16.mxu0 0
    %81 = vmatpush1.bf16.msra.mxu0 0
    %82 = vmatprep.subr.bf16.mxu0 0
    %83 = vmatpush1.bf16.msra.mxu0 0
    %84 = vmatprep.subr.bf16.mxu0 0
    %85 = vmatpush1.bf16.msra.mxu0 0
    %86 = vmatprep.subr.bf16.mxu0 0
    %87 = vmatpush1.bf16.msra.mxu0 0
    %88 = vmatprep.subr.bf16.mxu0 0
    %89 = vmatpush1.bf16.msra.mxu0 0
    %90 = vmatprep.subr.bf16.mxu0 0
    %91 = vmatpush1.bf16.msra.mxu0 0
    %92 = vmatprep.subr.bf16.mxu0 0
    %93 = vmatpush1.bf16.msra.mxu0 0
    %94 = vmatprep.subr.bf16.mxu0 0
    %95 = vmatpush1.bf16.msra.mxu0 0
    %96 = vmatprep.subr.bf16.mxu0 0
    %97 = vmatpush1.bf16.msra.mxu0 0
    %98 = vmatprep.subr.bf16.mxu0 0
    %99 = vmatpush1.bf16.msra.mxu0 0
    %100 = vmatprep.subr.bf16.mxu0 0
    %101 = vmatpush1.bf16.msra.mxu0 0
    %102 = vmatprep.subr.bf16.mxu0 0
    %103 = vmatpush1.bf16.msra.mxu0 0
    %104 = vmatprep.mubr.bf16.mxu0 0
    %105 = vmatmul.mubr.bf16.gmra.mrb[0].mxu0 %v70
    %v106 = vpop.f32.mrb[0].mxu0
    %v107 = vadd.f32 %v61, %v106
    %v108 = vpop.f32.mrb[0].mxu0
    %v109 = vpop.f32.mrb[0].mxu0
    %v110 = vpop.f32.mrb[0].mxu0
    %111 = vdwg.mxu0
    %v112 = vmax.f32 %v107, 0.0
    %v113 = vpack.c.bf16 %v112, %v112
    %s114 = scalar_lea.vmem [#allocation5], 32
    %v115 = vld [vmem:[%s114] sm:$0xf]
    %v116 = vld [vmem:[%s114 + $0x4] sm:$0xf]
    %v117 = vld [vmem:[%s114 + $0x8] sm:$0xf]
    %v118 = vld [vmem:[%s114 + $0xc] sm:$0xf]
    %v119 = vld [vmem:[%s114 + $0x10] sm:$0xf]
    %v120 = vld [vmem:[%s114 + $0x14] sm:$0xf]
    %v121 = vld [vmem:[%s114 + $0x18] sm:$0xf]
    %v122 = vld [vmem:[%s114 + $0x1c] sm:$0xf]
    %v123 = vlaneseq
    %v124 = vshrl.u32 %v123, 7
    %v125 = vsub.s32 1, %v124
    %v126 = vrot.slane %v53, %v125
    %v135 = vunpack.c.l.b16 %v115
    %v136 = vunpack.c.l.b16 %v116
    %v137 = vunpack.c.l.b16 %v117
    %v138 = vunpack.c.l.b16 %v118
    %v139 = vunpack.c.l.b16 %v119
    %v140 = vunpack.c.l.b16 %v120
    %v141 = vunpack.c.l.b16 %v121
    %v142 = vunpack.c.l.b16 %v122
    %v143 = vpack.c.b16 %v136, %v135
    %v144 = vpack.c.b16 %v138, %v137
    %v145 = vpack.c.b16 %v140, %v139
    %v146 = vpack.c.b16 %v142, %v141
    %vm151 = vcmask 523264
    %v153 = vsel %vm151, %v113, 0
    %155 = vmatprep.subr.bf16.mxu0 0
    %156 = vmatpush1.bf16.msra.mxu0 %v143
    %157 = vmatprep.subr.bf16.mxu0 0
    %158 = vmatpush1.bf16.msra.mxu0 %v144
    %159 = vmatprep.subr.bf16.mxu0 0
    %160 = vmatpush1.bf16.msra.mxu0 %v145
    %161 = vmatprep.subr.bf16.mxu0 0
    %162 = vmatpush1.bf16.msra.mxu0 %v146
    %163 = vmatprep.subr.bf16.mxu0 0
    %164 = vmatpush1.bf16.msra.mxu0 0
    %165 = vmatprep.subr.bf16.mxu0 0
    %166 = vmatpush1.bf16.msra.mxu0 0
    %167 = vmatprep.subr.bf16.mxu0 0
    %168 = vmatpush1.bf16.msra.mxu0 0
    %169 = vmatprep.subr.bf16.mxu0 0
    %170 = vmatpush1.bf16.msra.mxu0 0
    %171 = vmatprep.subr.bf16.mxu0 0
    %172 = vmatpush1.bf16.msra.mxu0 0
    %173 = vmatprep.subr.bf16.mxu0 0
    %174 = vmatpush1.bf16.msra.mxu0 0
    %175 = vmatprep.subr.bf16.mxu0 0
    %176 = vmatpush1.bf16.msra.mxu0 0
    %177 = vmatprep.subr.bf16.mxu0 0
    %178 = vmatpush1.bf16.msra.mxu0 0
    %179 = vmatprep.subr.bf16.mxu0 0
    %180 = vmatpush1.bf16.msra.mxu0 0
    %181 = vmatprep.subr.bf16.mxu0 0
    %182 = vmatpush1.bf16.msra.mxu0 0
    %183 = vmatprep.subr.bf16.mxu0 0
    %184 = vmatpush1.bf16.msra.mxu0 0
    %185 = vmatprep.subr.bf16.mxu0 0
    %186 = vmatpush1.bf16.msra.mxu0 0
    %187 = vmatprep.mubr.bf16.mxu0 0
    %188 = vmatmul.mubr.bf16.gmra.mrb[0].mxu0 %v153
    %v189 = vpop.f32.mrb[0].mxu0
    %v190 = vadd.f32 %v126, %v189
    %v191 = vpop.f32.mrb[0].mxu0
    %v192 = vpop.f32.mrb[0].mxu0
    %v193 = vpop.f32.mrb[0].mxu0
    %194 = vdwg.mxu0
    %v195 = vmax.f32 %v190, 0.0
    %v196 = vpack.c.bf16 %v195, %v195
    %s197 = scalar_lea.vmem [#allocation5], 64
    %v198 = vld [vmem:[%s197] sm:$0xf]
    %v199 = vld [vmem:[%s197 + $0x4] sm:$0xf]
    %v200 = vld [vmem:[%s197 + $0x8] sm:$0xf]
    %v201 = vld [vmem:[%s197 + $0xc] sm:$0xf]
    %v202 = vld [vmem:[%s197 + $0x10] sm:$0xf]
    %v203 = vld [vmem:[%s197 + $0x14] sm:$0xf]
    %v204 = vld [vmem:[%s197 + $0x18] sm:$0xf]
    %v205 = vld [vmem:[%s197 + $0x1c] sm:$0xf]
    %v206 = vlaneseq
    %v207 = vshrl.u32 %v206, 7
    %v208 = vsub.s32 2, %v207
    %v209 = vrot.slane %v53, %v208
    %v218 = vunpack.c.l.b16 %v198
    %v219 = vunpack.c.l.b16 %v199
    %v220 = vunpack.c.l.b16 %v200
    %v221 = vunpack.c.l.b16 %v201
    %v222 = vunpack.c.l.b16 %v202
    %v223 = vunpack.c.l.b16 %v203
    %v224 = vunpack.c.l.b16 %v204
    %v225 = vunpack.c.l.b16 %v205
    %v226 = vpack.c.b16 %v219, %v218
    %v227 = vpack.c.b16 %v221, %v220
    %v228 = vpack.c.b16 %v223, %v222
    %v229 = vpack.c.b16 %v225, %v224
    %v235 = vsel %vm151, %v196, 0
    %237 = vmatprep.subr.bf16.mxu0 0
    %238 = vmatpush1.bf16.msra.mxu0 %v226
    %239 = vmatprep.subr.bf16.mxu0 0
    %240 = vmatpush1.bf16.msra.mxu0 %v227
    %241 = vmatprep.subr.bf16.mxu0 0
    %242 = vmatpush1.bf16.msra.mxu0 %v228
    %243 = vmatprep.subr.bf16.mxu0 0
    %244 = vmatpush1.bf16.msra.mxu0 %v229
    %245 = vmatprep.subr.bf16.mxu0 0
    %246 = vmatpush1.bf16.msra.mxu0 0
    %247 = vmatprep.subr.bf16.mxu0 0
    %248 = vmatpush1.bf16.msra.mxu0 0
    %249 = vmatprep.subr.bf16.mxu0 0
    %250 = vmatpush1.bf16.msra.mxu0 0
    %251 = vmatprep.subr.bf16.mxu0 0
    %252 = vmatpush1.bf16.msra.mxu0 0
    %253 = vmatprep.subr.bf16.mxu0 0
    %254 = vmatpush1.bf16.msra.mxu0 0
    %255 = vmatprep.subr.bf16.mxu0 0
    %256 = vmatpush1.bf16.msra.mxu0 0
    %257 = vmatprep.subr.bf16.mxu0 0
    %258 = vmatpush1.bf16.msra.mxu0 0
    %259 = vmatprep.subr.bf16.mxu0 0
    %260 = vmatpush1.bf16.msra.mxu0 0
    %261 = vmatprep.subr.bf16.mxu0 0
    %262 = vmatpush1.bf16.msra.mxu0 0
    %263 = vmatprep.subr.bf16.mxu0 0
    %264 = vmatpush1.bf16.msra.mxu0 0
    %265 = vmatprep.subr.bf16.mxu0 0
    %266 = vmatpush1.bf16.msra.mxu0 0
    %267 = vmatprep.subr.bf16.mxu0 0
    %268 = vmatpush1.bf16.msra.mxu0 0
    %269 = vmatprep.mubr.bf16.mxu0 0
    %270 = vmatmul.mubr.bf16.gmra.mrb[0].mxu0 %v235
    %v271 = vpop.f32.mrb[0].mxu0
    %v272 = vadd.f32 %v209, %v271
    %v273 = vpop.f32.mrb[0].mxu0
    %v274 = vpop.f32.mrb[0].mxu0
    %v275 = vpop.f32.mrb[0].mxu0
    %276 = vdwg.mxu0
    %v277 = vmax.f32 %v272, 0.0
    %v278 = vpack.c.bf16 %v277, %v277
    %s279 = scalar_lea.vmem [#allocation5], 96
    %v280 = vld [vmem:[%s279] sm:$0xf]
    %v281 = vld [vmem:[%s279 + $0x4] sm:$0xf]
    %v282 = vld [vmem:[%s279 + $0x8] sm:$0xf]
    %v283 = vld [vmem:[%s279 + $0xc] sm:$0xf]
    %v284 = vld [vmem:[%s279 + $0x10] sm:$0xf]
    %v285 = vld [vmem:[%s279 + $0x14] sm:$0xf]
    %v286 = vld [vmem:[%s279 + $0x18] sm:$0xf]
    %v287 = vld [vmem:[%s279 + $0x1c] sm:$0xf]
    %v288 = vlaneseq
    %v289 = vshrl.u32 %v288, 7
    %v290 = vsub.s32 3, %v289
    %v291 = vrot.slane %v53, %v290
    %v300 = vunpack.c.l.b16 %v280
    %v301 = vunpack.c.l.b16 %v281
    %v302 = vunpack.c.l.b16 %v282
    %v303 = vunpack.c.l.b16 %v283
    %v304 = vunpack.c.l.b16 %v284
    %v305 = vunpack.c.l.b16 %v285
    %v306 = vunpack.c.l.b16 %v286
    %v307 = vunpack.c.l.b16 %v287
    %v308 = vpack.c.b16 %v301, %v300
    %v309 = vpack.c.b16 %v303, %v302
    %v310 = vpack.c.b16 %v305, %v304
    %v311 = vpack.c.b16 %v307, %v306
    %v317 = vsel %vm151, %v278, 0
    %319 = vmatprep.subr.bf16.mxu0 0
    %320 = vmatpush1.bf16.msra.mxu0 %v308
    %321 = vmatprep.subr.bf16.mxu0 0
    %322 = vmatpush1.bf16.msra.mxu0 %v309
    %323 = vmatprep.subr.bf16.mxu0 0
    %324 = vmatpush1.bf16.msra.mxu0 %v310
    %325 = vmatprep.subr.bf16.mxu0 0
    %326 = vmatpush1.bf16.msra.mxu0 %v311
    %327 = vmatprep.subr.bf16.mxu0 0
    %328 = vmatpush1.bf16.msra.mxu0 0
    %329 = vmatprep.subr.bf16.mxu0 0
    %330 = vmatpush1.bf16.msra.mxu0 0
    %331 = vmatprep.subr.bf16.mxu0 0
    %332 = vmatpush1.bf16.msra.mxu0 0
    %333 = vmatprep.subr.bf16.mxu0 0
    %334 = vmatpush1.bf16.msra.mxu0 0
    %335 = vmatprep.subr.bf16.mxu0 0
    %336 = vmatpush1.bf16.msra.mxu0 0
    %337 = vmatprep.subr.bf16.mxu0 0
    %338 = vmatpush1.bf16.msra.mxu0 0
    %339 = vmatprep.subr.bf16.mxu0 0
    %340 = vmatpush1.bf16.msra.mxu0 0
    %341 = vmatprep.subr.bf16.mxu0 0
    %342 = vmatpush1.bf16.msra.mxu0 0
    %343 = vmatprep.subr.bf16.mxu0 0
    %344 = vmatpush1.bf16.msra.mxu0 0
    %345 = vmatprep.subr.bf16.mxu0 0
    %346 = vmatpush1.bf16.msra.mxu0 0
    %347 = vmatprep.subr.bf16.mxu0 0
    %348 = vmatpush1.bf16.msra.mxu0 0
    %349 = vmatprep.subr.bf16.mxu0 0
    %350 = vmatpush1.bf16.msra.mxu0 0
    %351 = vmatprep.mubr.bf16.mxu0 0
    %352 = vmatmul.mubr.bf16.gmra.mrb[0].mxu0 %v317
    %v353 = vpop.f32.mrb[0].mxu0
    %v354 = vadd.f32 %v291, %v353
    %v355 = vpop.f32.mrb[0].mxu0
    %v356 = vpop.f32.mrb[0].mxu0
    %v357 = vpop.f32.mrb[0].mxu0
    %358 = vdwg.mxu0
    %v359 = vmax.f32 %v354, 0.0
    %v360 = vpack.c.bf16 %v359, %v359
    %s361 = scalar_lea.vmem [#allocation5], 128
    %v362 = vld [vmem:[%s361] sm:$0xf]
    %v363 = vld [vmem:[%s361 + $0x4] sm:$0xf]
    %v364 = vld [vmem:[%s361 + $0x8] sm:$0xf]
    %v365 = vld [vmem:[%s361 + $0xc] sm:$0xf]
    %v366 = vld [vmem:[%s361 + $0x10] sm:$0xf]
    %v367 = vld [vmem:[%s361 + $0x14] sm:$0xf]
    %v368 = vld [vmem:[%s361 + $0x18] sm:$0xf]
    %v369 = vld [vmem:[%s361 + $0x1c] sm:$0xf]
    %v370 = vlaneseq
    %v371 = vshrl.u32 %v370, 7
    %v372 = vsub.s32 4, %v371
    %v373 = vrot.slane %v53, %v372
    %v382 = vunpack.c.l.b16 %v362
    %v383 = vunpack.c.l.b16 %v363
    %v384 = vunpack.c.l.b16 %v364
    %v385 = vunpack.c.l.b16 %v365
    %v386 = vunpack.c.l.b16 %v366
    %v387 = vunpack.c.l.b16 %v367
    %v388 = vunpack.c.l.b16 %v368
    %v389 = vunpack.c.l.b16 %v369
    %v390 = vpack.c.b16 %v383, %v382
    %v391 = vpack.c.b16 %v385, %v384
    %v392 = vpack.c.b16 %v387, %v386
    %v393 = vpack.c.b16 %v389, %v388
    %v399 = vsel %vm151, %v360, 0
    %401 = vmatprep.subr.bf16.mxu0 0
    %402 = vmatpush1.bf16.msra.mxu0 %v390
    %403 = vmatprep.subr.bf16.mxu0 0
    %404 = vmatpush1.bf16.msra.mxu0 %v391
    %405 = vmatprep.subr.bf16.mxu0 0
    %406 = vmatpush1.bf16.msra.mxu0 %v392
    %407 = vmatprep.subr.bf16.mxu0 0
    %408 = vmatpush1.bf16.msra.mxu0 %v393
    %409 = vmatprep.subr.bf16.mxu0 0
    %410 = vmatpush1.bf16.msra.mxu0 0
    %411 = vmatprep.subr.bf16.mxu0 0
    %412 = vmatpush1.bf16.msra.mxu0 0
    %413 = vmatprep.subr.bf16.mxu0 0
    %414 = vmatpush1.bf16.msra.mxu0 0
    %415 = vmatprep.subr.bf16.mxu0 0
    %416 = vmatpush1.bf16.msra.mxu0 0
    %417 = vmatprep.subr.bf16.mxu0 0
    %418 = vmatpush1.bf16.msra.mxu0 0
    %419 = vmatprep.subr.bf16.mxu0 0
    %420 = vmatpush1.bf16.msra.mxu0 0
    %421 = vmatprep.subr.bf16.mxu0 0
    %422 = vmatpush1.bf16.msra.mxu0 0
    %423 = vmatprep.subr.bf16.mxu0 0
    %424 = vmatpush1.bf16.msra.mxu0 0
    %425 = vmatprep.subr.bf16.mxu0 0
    %426 = vmatpush1.bf16.msra.mxu0 0
    %427 = vmatprep.subr.bf16.mxu0 0
    %428 = vmatpush1.bf16.msra.mxu0 0
    %429 = vmatprep.subr.bf16.mxu0 0
    %430 = vmatpush1.bf16.msra.mxu0 0
    %431 = vmatprep.subr.bf16.mxu0 0
    %432 = vmatpush1.bf16.msra.mxu0 0
    %433 = vmatprep.mubr.bf16.mxu0 0
    %434 = vmatmul.mubr.bf16.gmra.mrb[0].mxu0 %v399
    %v435 = vpop.f32.mrb[0].mxu0
    %v436 = vadd.f32 %v373, %v435
    %v437 = vpop.f32.mrb[0].mxu0
    %v438 = vpop.f32.mrb[0].mxu0
    %v439 = vpop.f32.mrb[0].mxu0
    %440 = vdwg.mxu0
    %441 = vst.msk [vmem:[#allocation8] sm:$0xff] %vm68, %v436
    // Predicated region
    $region26: #{dummy_nn_sort_forward.1} parent=1 // pred_check
      _
    $region27: #{dummy_nn_sort_forward.1} parent=1 // pred_check_branch
      %443 = sbr.rel (0) target = $region29
    $region28: #{dummy_nn_sort_forward.1} parent=1 // pred_region
      %s445 = ssub.s32 128, 128
      %446 = vsyncadd [#allocation4], %s445
      %s448 = sshll.u32 [#allocation8], 4
      %s449 = int_to_ptr.vmem [resolvable:$true] %s448
      %451 = dma.vmem_to_hbm [thread:$0]  %s449, 128, %s3, [#allocation4]
    $region29: #{dummy_nn_sort_forward.1} parent=1 // pred_fallthru
      _
    // Predicated region
    $region30: #{dummy_nn_sort_forward.1} parent=1 // pred_check
      _
    $region31: #{dummy_nn_sort_forward.1} parent=1 // pred_check_branch
      %453 = sbr.rel (0) target = $region33
    $region32: #{dummy_nn_sort_forward.1} parent=1 // pred_region
      %454 = dma.done [#allocation4], 128
    $region33: #{dummy_nn_sort_forward.1} parent=1 // pred_fallthru
      _
    %455 = vsyncpa [#allocation3], 1
    %456 = vsyncpa [#allocation6], 1
    %457 = vsyncpa [#allocation4], 1

</llo_original>
